<compile_context>
chip_gen: v6e
topology: v6e:2x2x1
jax: 0.10.0
libtpu: 0.0.40
codegen_flags: <defaults>
</compile_context>

<pallas_src>
import jax
import jax.numpy as jnp
from jax.experimental import pallas as pl
from jax.experimental.pallas import tpu as pltpu

_LANE = 128          # lane width (for VMEM-footprint estimation only)
_DEFAULT_TB = 2048   # batch tile (rows); multiple of 8


def _round_up(n, m):
    return ((n + m - 1) // m) * m


def mlp_kernel(x_ref, w1_ref, b1_ref, w2_ref, b2_ref, o_ref):
    # x_ref: (TB, F), w1_ref: (F, H), b1_ref: (1, H) f32,
    # w2_ref: (H, O), b2_ref: (1, O) f32, o_ref: (TB, O)
    x = x_ref[...]
    # First matmul: native-dtype operands, f32 accumulation on the MXU.
    h = jnp.dot(x, w1_ref[...], preferred_element_type=jnp.float32) + b1_ref[...]
    h = jnp.maximum(h, 0.0)                                   # ReLU (VPU)
    # Second matmul: cast activation back to operand dtype (no-op for f32).
    y = jnp.dot(h.astype(w2_ref.dtype), w2_ref[...],
                preferred_element_type=jnp.float32) + b2_ref[...]
    o_ref[...] = y.astype(o_ref.dtype)                        # narrow store (O cols)


def mlp_forward(x, w1, b1, w2, b2, *, tb=_DEFAULT_TB):
    """y = relu(x @ w1 + b1) @ w2 + b2, computed with a batch-tiled Pallas kernel."""
    B, F = x.shape
    H = w1.shape[1]
    O = w2.shape[1]

    # Biases as (1, dim) f32 rows (broadcast over the batch tile).
    b1_2d = b1.reshape(1, H).astype(jnp.float32)
    b2_2d = b2.reshape(1, O).astype(jnp.float32)

    # Batch tiling: TB a multiple of 8 (defensive round-up of user tb), capped
    # so a large B yields >= ~4 tiles (v7x megacore gets work on both TCs), and
    # never larger than B rounded up to 8.  No host-side padding of x: the grid
    # uses cdiv and Pallas pads/masks the partial edge block.
    tb = max(8, _round_up(tb, 8))
    tb_core_cap = max(8, _round_up(pl.cdiv(B, 4), 8))
    TB = min(tb, tb_core_cap, _round_up(B, 8))
    grid = (pl.cdiv(B, TB),)

    # VMEM budget estimate (lane-padded last dims, double-buffered streaming
    # tiles, f32 intermediates).  Kept well under the v7x 64 MiB physical VMEM;
    # v5e/v6e (128 MiB) have even more headroom.
    itemsize = jnp.dtype(x.dtype).itemsize
    F_l = _round_up(F, _LANE)
    H_l = _round_up(H, _LANE)
    O_l = _round_up(O, _LANE)
    est = (2 * TB * F_l * itemsize            # x tiles (double-buffered)
           + 2 * TB * O_l * itemsize          # out tiles (double-buffered)
           + _round_up(F, 8) * H_l * itemsize # W1 (resident)
           + _round_up(H, 8) * O_l * itemsize # W2 (resident)
           + 8 * (H_l + O_l) * 4              # biases
           + 2 * TB * H_l * 4)                # h / y f32 intermediates
    vmem_limit = min(48 * 1024 * 1024, max(8 * 1024 * 1024, 2 * est))

    return pl.pallas_call(
        mlp_kernel,
        out_shape=jax.ShapeDtypeStruct((B, O), x.dtype),
        grid=grid,
        in_specs=[
            pl.BlockSpec((TB, F), lambda i: (i, 0)),   # x: streamed over batch
            pl.BlockSpec((F, H), lambda i: (0, 0)),    # W1: VMEM-resident
            pl.BlockSpec((1, H), lambda i: (0, 0)),    # b1
            pl.BlockSpec((H, O), lambda i: (0, 0)),    # W2
            pl.BlockSpec((1, O), lambda i: (0, 0)),    # b2
        ],
        out_specs=pl.BlockSpec((TB, O), lambda i: (i, 0)),   # narrow output
        compiler_params=pltpu.CompilerParams(
            dimension_semantics=("parallel",),         # shard batch tiles across TCs
            vmem_limit_bytes=int(vmem_limit),
        ),
    )(x, w1, b1_2d, w2, b2_2d)


if __name__ == "__main__":
    key = jax.random.PRNGKey(0)
    # features.shape[1] is data-dependent in the original script; pick F=32.
    B, F, H, O = 8, 32, 64, 2

    kx, kw1, kb1, kw2, kb2 = jax.random.split(key, 5)
    x = jax.random.normal(kx, (B, F), dtype=jnp.float32)

    # PyTorch-Linear-like uniform fan-in init (deterministic).
    lim1 = 1.0 / jnp.sqrt(F)
    lim2 = 1.0 / jnp.sqrt(H)
    w1 = jax.random.uniform(kw1, (F, H), minval=-lim1, maxval=lim1, dtype=jnp.float32)
    b1 = jax.random.uniform(kb1, (H,), minval=-lim1, maxval=lim1, dtype=jnp.float32)
    w2 = jax.random.uniform(kw2, (H, O), minval=-lim2, maxval=lim2, dtype=jnp.float32)
    b2 = jax.random.uniform(kb2, (O,), minval=-lim2, maxval=lim2, dtype=jnp.float32)

    y = mlp_forward(x, w1, b1, w2, b2)
    jax.block_until_ready(y)

    # Reference check in plain JAX (f32 path; bf16 inputs would need a looser tolerance).
    y_ref = jnp.maximum(x @ w1 + b1, 0.0) @ w2 + b2
    assert y.shape == (B, O)
    assert jnp.allclose(y, y_ref, atol=1e-5, rtol=1e-5)

    print("KERNEL_OK")
</pallas_src>

<mosaic_0001>
module attributes {stable_mosaic.version = 11 : i64} {
  func.func @mlp_kernel(%arg0: i32, %arg1: memref<8x32xf32, #tpu.memory_space<vmem>>, %arg2: memref<32x64xf32, #tpu.memory_space<vmem>>, %arg3: memref<1x64xf32, #tpu.memory_space<vmem>>, %arg4: memref<64x2xf32, #tpu.memory_space<vmem>>, %arg5: memref<1x2xf32, #tpu.memory_space<vmem>>, %arg6: memref<8x2xf32, #tpu.memory_space<vmem>>) attributes {dimension_semantics = [#tpu.dimension_semantics<parallel>], iteration_bounds = array<i64: 1>, scalar_prefetch = 0 : i64, scratch_operands = 0 : i64, tpu.core_type = #tpu.core_type<tc>, window_params = [{transform_indices = @transform_0, window_bounds = array<i64: 8, 32>}, {pipeline_mode = #tpu.pipeline_mode<synchronous>, transform_indices = @transform_1, window_bounds = array<i64: 32, 64>}, {pipeline_mode = #tpu.pipeline_mode<synchronous>, transform_indices = @transform_2, window_bounds = array<i64: 1, 64>}, {pipeline_mode = #tpu.pipeline_mode<synchronous>, transform_indices = @transform_3, window_bounds = array<i64: 64, 2>}, {pipeline_mode = #tpu.pipeline_mode<synchronous>, transform_indices = @transform_4, window_bounds = array<i64: 1, 2>}, {transform_indices = @transform_5, window_bounds = array<i64: 8, 2>}]} {
    %c0 = arith.constant 0 : index
    %c0_0 = arith.constant 0 : index
    %0 = vector.load %arg1[%c0, %c0_0] : memref<8x32xf32, #tpu.memory_space<vmem>>, vector<8x32xf32>
    %c0_1 = arith.constant 0 : index
    %c0_2 = arith.constant 0 : index
    %1 = vector.load %arg2[%c0_1, %c0_2] : memref<32x64xf32, #tpu.memory_space<vmem>>, vector<32x64xf32>
    %cst = arith.constant dense<0.000000e+00> : vector<8x64xf32>
    %2 = tpu.matmul %0, %1, %cst {dimension_numbers = #tpu.dot_dimension_numbers<[1], [0], [0], [1], [0, 0, 1, 1], [], []>} : vector<8x32xf32>, vector<32x64xf32>, vector<8x64xf32> -> vector<8x64xf32>
    %c0_3 = arith.constant 0 : index
    %c0_4 = arith.constant 0 : index
    %3 = vector.load %arg3[%c0_3, %c0_4] : memref<1x64xf32, #tpu.memory_space<vmem>>, vector<1x64xf32>
    %4 = vector.broadcast %3 : vector<1x64xf32> to vector<8x64xf32>
    %5 = arith.addf %2, %4 : vector<8x64xf32>
    %cst_5 = arith.constant 0.000000e+00 : f32
    %6 = vector.broadcast %cst_5 : f32 to vector<8x64xf32>
    %7 = arith.maximumf %5, %6 : vector<8x64xf32>
    %c0_6 = arith.constant 0 : index
    %c0_7 = arith.constant 0 : index
    %8 = vector.load %arg4[%c0_6, %c0_7] : memref<64x2xf32, #tpu.memory_space<vmem>>, vector<64x2xf32>
    %cst_8 = arith.constant dense<0.000000e+00> : vector<8x2xf32>
    %9 = tpu.matmul %7, %8, %cst_8 {dimension_numbers = #tpu.dot_dimension_numbers<[1], [0], [0], [1], [0, 0, 1, 1], [], []>} : vector<8x64xf32>, vector<64x2xf32>, vector<8x2xf32> -> vector<8x2xf32>
    %c0_9 = arith.constant 0 : index
    %c0_10 = arith.constant 0 : index
    %10 = vector.load %arg5[%c0_9, %c0_10] : memref<1x2xf32, #tpu.memory_space<vmem>>, vector<1x2xf32>
    %11 = vector.broadcast %10 : vector<1x2xf32> to vector<8x2xf32>
    %12 = arith.addf %9, %11 : vector<8x2xf32>
    %c0_11 = arith.constant 0 : index
    %c0_12 = arith.constant 0 : index
    %13 = vector.load %arg6[%c0_11, %c0_12] : memref<8x2xf32, #tpu.memory_space<vmem>>, vector<8x2xf32>
    tpu.vector_store %arg6[%c0_11, %c0_12], %12 {strides = array<i32>} : memref<8x2xf32, #tpu.memory_space<vmem>>, vector<8x2xf32>,
    return
  }
  func.func @transform_0(%arg0: i32) -> (i32, i32) {
    %c0_i32 = arith.constant 0 : i32
    %c0_i32_0 = arith.constant 0 : i32
    return %arg0, %c0_i32 : i32, i32
  }
  func.func @transform_1(%arg0: i32) -> (i32, i32) {
    %c0_i32 = arith.constant 0 : i32
    %c0_i32_0 = arith.constant 0 : i32
    %c0_i32_1 = arith.constant 0 : i32
    return %c0_i32, %c0_i32_0 : i32, i32
  }
  func.func @transform_2(%arg0: i32) -> (i32, i32) {
    %c0_i32 = arith.constant 0 : i32
    %c0_i32_0 = arith.constant 0 : i32
    %c0_i32_1 = arith.constant 0 : i32
    return %c0_i32, %c0_i32_0 : i32, i32
  }
  func.func @transform_3(%arg0: i32) -> (i32, i32) {
    %c0_i32 = arith.constant 0 : i32
    %c0_i32_0 = arith.constant 0 : i32
    %c0_i32_1 = arith.constant 0 : i32
    return %c0_i32, %c0_i32_0 : i32, i32
  }
  func.func @transform_4(%arg0: i32) -> (i32, i32) {
    %c0_i32 = arith.constant 0 : i32
    %c0_i32_0 = arith.constant 0 : i32
    %c0_i32_1 = arith.constant 0 : i32
    return %c0_i32, %c0_i32_0 : i32, i32
  }
  func.func @transform_5(%arg0: i32) -> (i32, i32) {
    %c0_i32 = arith.constant 0 : i32
    %c0_i32_0 = arith.constant 0 : i32
    return %arg0, %c0_i32 : i32, i32
  }
}

</mosaic_0001>

<llo_original>
// kernel: tpu_custom_call.1
$region0: #{tpu_custom_call.1}
  #allocation0 [shape = 'u32[]', space=smem, size = 0x4, offset = 0x4, fixed_abs, tag = 'smem constant byte address 0x4 - core index']
  #allocation1 [shape = 'u32[144,128]{1,0:T(1,128)}', space=vmem, size = 0x12000, scoped, tag = 'internal scratch']
  %s0 = inlined_call_operand.vmem [shape: f32[8,32], index: 0, kind: input, shape index: {}]
  %s1 = inlined_call_operand.vmem [shape: f32[32,64], index: 1, kind: input, shape index: {}]
  %s2 = inlined_call_operand.vmem [shape: f32[1,64], index: 2, kind: input, shape index: {}]
  %s3 = inlined_call_operand.vmem [shape: f32[64,2], index: 3, kind: input, shape index: {}]
  %s4 = inlined_call_operand.vmem [shape: f32[1,2], index: 4, kind: input, shape index: {}]
  %s5 = inlined_call_operand.vmem [shape: f32[8,2], index: 5, kind: output, shape index: {}]
  %s6 = sld [smem:[#allocation0]]
  $region30: #{tpu_custom_call.1} parent=0
    _
  %s8 = ssub.s32 1, %s6
  %s9 = scalar_select 0, %s8, %s6
  // Predicated region
  $region2: #{tpu_custom_call.1} parent=0 // pred_check
    _
  $region3: #{tpu_custom_call.1} parent=0 // pred_check_branch
    %11 = sbr.rel (0) target = $region5
  $region4: #{tpu_custom_call.1} parent=0 // pred_region
    _
  $region5: #{tpu_custom_call.1} parent=0 // pred_fallthru
    _
  // Predicated region
  $region6: #{tpu_custom_call.1} parent=0 // pred_check
    _
  $region7: #{tpu_custom_call.1} parent=0 // pred_check_branch
    %13 = sbr.rel (0) target = $region9
  $region8: #{tpu_custom_call.1} parent=0 // pred_region
    _
  $region9: #{tpu_custom_call.1} parent=0 // pred_fallthru
    _
  // Predicated region
  $region10: #{tpu_custom_call.1} parent=0 // pred_check
    _
  $region11: #{tpu_custom_call.1} parent=0 // pred_check_branch
    %15 = sbr.rel (0) target = $region13
  $region12: #{tpu_custom_call.1} parent=0 // pred_region
    _
  $region13: #{tpu_custom_call.1} parent=0 // pred_fallthru
    _
  // Predicated region
  $region14: #{tpu_custom_call.1} parent=0 // pred_check
    _
  $region15: #{tpu_custom_call.1} parent=0 // pred_check_branch
    %17 = sbr.rel (0) target = $region17
  $region16: #{tpu_custom_call.1} parent=0 // pred_region
    _
  $region17: #{tpu_custom_call.1} parent=0 // pred_fallthru
    _
  // Predicated region
  $region18: #{tpu_custom_call.1} parent=0 // pred_check
    _
  $region19: #{tpu_custom_call.1} parent=0 // pred_check_branch
    %19 = sbr.rel (0) target = $region21
  $region20: #{tpu_custom_call.1} parent=0 // pred_region
    _
  $region21: #{tpu_custom_call.1} parent=0 // pred_fallthru
    _
  %v20 = vld [vmem:[%s0] sm:$0xff]
  %v21 = vld [vmem:[%s1] sm:$0xff]
  %v22 = vld [vmem:[%s1 + $0x8] sm:$0xff]
  %v23 = vld [vmem:[%s1 + $0x10] sm:$0xff]
  %v24 = vld [vmem:[%s1 + $0x18] sm:$0xff]
  %v25 = vld [vmem:[%s2] sm:$0x1]
  %v27 = vlaneseq
  %v28 = vshrl.u32 %v27, 7
  %v29 = vsub.s32 0, %v28
  %v30 = vrot.slane %v25, %v29
  %vm32 = vcmask 261120
  %v34 = vsel %vm32, %v20, 0
  %36 = vmatprep.subr.mxu0 0.0
  %37 = vmatpush1.msra.mxu0 0.0
  %38 = vmatprep.subr.mxu0 0.0
  %39 = vmatpush1.msra.mxu0 0.0
  %40 = vmatprep.subr.mxu0 0.0
  %41 = vmatpush1.msra.mxu0 0.0
  %42 = vmatprep.subr.mxu0 0.0
  %43 = vmatpush1.msra.mxu0 0.0
  %44 = vmatprep.subr.mxu0 0.0
  %45 = vmatpush1.msra.mxu0 0.0
  %46 = vmatprep.subr.mxu0 0.0
  %47 = vmatpush1.msra.mxu0 0.0
  %48 = vmatprep.subr.mxu0 0.0
  %49 = vmatpush1.msra.mxu0 0.0
  %50 = vmatprep.subr.mxu0 0.0
  %51 = vmatpush1.msra.mxu0 0.0
  %52 = vmatprep.subr.mxu0 0.0
  %53 = vmatpush1.msra.mxu0 0.0
  %54 = vmatprep.subr.mxu0 0.0
  %55 = vmatpush1.msra.mxu0 0.0
  %56 = vmatprep.subr.mxu0 0.0
  %57 = vmatpush1.msra.mxu0 0.0
  %58 = vmatprep.subr.mxu0 0.0
  %59 = vmatpush1.msra.mxu0 0.0
  %60 = vmatprep.subr.mxu0 0.0
  %61 = vmatpush1.msra.mxu0 %v24
  %62 = vmatprep.subr.mxu0 0.0
  %63 = vmatpush1.msra.mxu0 %v23
  %64 = vmatprep.subr.mxu0 0.0
  %65 = vmatpush1.msra.mxu0 %v22
  %66 = vmatprep.subr.mxu0 0.0
  %67 = vmatpush1.msra.mxu0 %v21
  %68 = vmatprep.subr.mxu0 0.0
  %69 = vmatpush2.msra.mxu0 0.0
  %70 = vmatprep.subr.mxu0 0.0
  %71 = vmatpush2.msra.mxu0 0.0
  %72 = vmatprep.subr.mxu0 0.0
  %73 = vmatpush2.msra.mxu0 0.0
  %74 = vmatprep.subr.mxu0 0.0
  %75 = vmatpush2.msra.mxu0 0.0
  %76 = vmatprep.subr.mxu0 0.0
  %77 = vmatpush2.msra.mxu0 0.0
  %78 = vmatprep.subr.mxu0 0.0
  %79 = vmatpush2.msra.mxu0 0.0
  %80 = vmatprep.subr.mxu0 0.0
  %81 = vmatpush2.msra.mxu0 0.0
  %82 = vmatprep.subr.mxu0 0.0
  %83 = vmatpush2.msra.mxu0 0.0
  %84 = vmatprep.subr.mxu0 0.0
  %85 = vmatpush2.msra.mxu0 0.0
  %86 = vmatprep.subr.mxu0 0.0
  %87 = vmatpush2.msra.mxu0 0.0
  %88 = vmatprep.subr.mxu0 0.0
  %89 = vmatpush2.msra.mxu0 0.0
  %90 = vmatprep.subr.mxu0 0.0
  %91 = vmatpush2.msra.mxu0 0.0
  %92 = vmatprep.subr.mxu0 0.0
  %93 = vmatpush2.msra.mxu0 0.0
  %94 = vmatprep.subr.mxu0 0.0
  %95 = vmatpush2.msra.mxu0 0.0
  %96 = vmatprep.subr.mxu0 0.0
  %97 = vmatpush2.msra.mxu0 0.0
  %98 = vmatprep.subr.mxu0 0.0
  %99 = vmatpush2.msra.mxu0 0.0
  %100 = vmatprep.mubr.f32.mxu0 0.0
  %101 = vmatmul.mubr.f32.gmra.mxu0 %v34
  %v102 = vpop.f32.mrf.mxu0
  %v103 = vadd.f32 %v30, %v102
  %v104 = vpop.f32.mrf.mxu0
  %105 = vdwg.mxu0
  %v106 = vmax.f32 %v103, 0.0
  %v107 = vld [vmem:[%s3] sm:$0xff]
  %v108 = vld [vmem:[%s3 + $0x8] sm:$0xff]
  %v109 = vld [vmem:[%s3 + $0x10] sm:$0xff]
  %v110 = vld [vmem:[%s3 + $0x18] sm:$0xff]
  %v111 = vld [vmem:[%s3 + $0x20] sm:$0xff]
  %v112 = vld [vmem:[%s3 + $0x28] sm:$0xff]
  %v113 = vld [vmem:[%s3 + $0x30] sm:$0xff]
  %v114 = vld [vmem:[%s3 + $0x38] sm:$0xff]
  %v115 = vld [vmem:[%s4] sm:$0x1]
  %v117 = vlaneseq
  %v118 = vshrl.u32 %v117, 7
  %v119 = vsub.s32 0, %v118
  %v120 = vrot.slane %v115, %v119
  %vm122 = vcmask 523264
  %v124 = vsel %vm122, %v106, 0
  %126 = vmatprep.subr.mxu0 0.0
  %127 = vmatpush1.msra.mxu0 0.0
  %128 = vmatprep.subr.mxu0 0.0
  %129 = vmatpush1.msra.mxu0 0.0
  %130 = vmatprep.subr.mxu0 0.0
  %131 = vmatpush1.msra.mxu0 0.0
  %132 = vmatprep.subr.mxu0 0.0
  %133 = vmatpush1.msra.mxu0 0.0
  %134 = vmatprep.subr.mxu0 0.0
  %135 = vmatpush1.msra.mxu0 0.0
  %136 = vmatprep.subr.mxu0 0.0
  %137 = vmatpush1.msra.mxu0 0.0
  %138 = vmatprep.subr.mxu0 0.0
  %139 = vmatpush1.msra.mxu0 0.0
  %140 = vmatprep.subr.mxu0 0.0
  %141 = vmatpush1.msra.mxu0 0.0
  %142 = vmatprep.subr.mxu0 0.0
  %143 = vmatpush1.msra.mxu0 %v114
  %144 = vmatprep.subr.mxu0 0.0
  %145 = vmatpush1.msra.mxu0 %v113
  %146 = vmatprep.subr.mxu0 0.0
  %147 = vmatpush1.msra.mxu0 %v112
  %148 = vmatprep.subr.mxu0 0.0
  %149 = vmatpush1.msra.mxu0 %v111
  %150 = vmatprep.subr.mxu0 0.0
  %151 = vmatpush1.msra.mxu0 %v110
  %152 = vmatprep.subr.mxu0 0.0
  %153 = vmatpush1.msra.mxu0 %v109
  %154 = vmatprep.subr.mxu0 0.0
  %155 = vmatpush1.msra.mxu0 %v108
  %156 = vmatprep.subr.mxu0 0.0
  %157 = vmatpush1.msra.mxu0 %v107
  %158 = vmatprep.subr.mxu0 0.0
  %159 = vmatpush2.msra.mxu0 0.0
  %160 = vmatprep.subr.mxu0 0.0
  %161 = vmatpush2.msra.mxu0 0.0
  %162 = vmatprep.subr.mxu0 0.0
  %163 = vmatpush2.msra.mxu0 0.0
  %164 = vmatprep.subr.mxu0 0.0
  %165 = vmatpush2.msra.mxu0 0.0
  %166 = vmatprep.subr.mxu0 0.0
  %167 = vmatpush2.msra.mxu0 0.0
  %168 = vmatprep.subr.mxu0 0.0
  %169 = vmatpush2.msra.mxu0 0.0
  %170 = vmatprep.subr.mxu0 0.0
  %171 = vmatpush2.msra.mxu0 0.0
  %172 = vmatprep.subr.mxu0 0.0
  %173 = vmatpush2.msra.mxu0 0.0
  %174 = vmatprep.subr.mxu0 0.0
  %175 = vmatpush2.msra.mxu0 0.0
  %176 = vmatprep.subr.mxu0 0.0
  %177 = vmatpush2.msra.mxu0 0.0
  %178 = vmatprep.subr.mxu0 0.0
  %179 = vmatpush2.msra.mxu0 0.0
  %180 = vmatprep.subr.mxu0 0.0
  %181 = vmatpush2.msra.mxu0 0.0
  %182 = vmatprep.subr.mxu0 0.0
  %183 = vmatpush2.msra.mxu0 0.0
  %184 = vmatprep.subr.mxu0 0.0
  %185 = vmatpush2.msra.mxu0 0.0
  %186 = vmatprep.subr.mxu0 0.0
  %187 = vmatpush2.msra.mxu0 0.0
  %188 = vmatprep.subr.mxu0 0.0
  %189 = vmatpush2.msra.mxu0 0.0
  %190 = vmatprep.mubr.f32.mxu0 0.0
  %191 = vmatmul.mubr.f32.gmra.mxu0 %v124
  %v192 = vpop.f32.mrf.mxu0
  %v193 = vadd.f32 %v120, %v192
  %v194 = vpop.f32.mrf.mxu0
  %195 = vdwg.mxu0
  %vm196 = vcmask 15360
  %197 = vst.msk [vmem:[%s5] sm:$0xff] %vm196, %v193
  // Predicated region
  $region22: #{tpu_custom_call.1} parent=0 // pred_check
    _
  $region23: #{tpu_custom_call.1} parent=0 // pred_check_branch
    %199 = sbr.rel (0) target = $region25
  $region24: #{tpu_custom_call.1} parent=0 // pred_region
    _
  $region25: #{tpu_custom_call.1} parent=0 // pred_fallthru
    _
  // Predicated region
  $region26: #{tpu_custom_call.1} parent=0 // pred_check
    _
  $region27: #{tpu_custom_call.1} parent=0 // pred_check_branch
    %201 = sbr.rel (0) target = $region29
  $region28: #{tpu_custom_call.1} parent=0 // pred_region
    _
  $region29: #{tpu_custom_call.1} parent=0 // pred_fallthru
    _

</llo_original>
